<compile_context>
chip_gen: v7x
topology: tpu7x:2x2x1
jax: 0.10.0
libtpu: 0.0.40
codegen_flags: <defaults>
</compile_context>

<pallas_src>
import functools

import jax
import jax.numpy as jnp
from jax import lax
from jax.experimental import pallas as pl
from jax.experimental.pallas import tpu as pltpu


def _expand_shuffle_ln_kernel(x_ref, w_ref, wgs_ref, gsum_ref, g_ref, b_ref, o_ref,
                              *, eps, ds, c_out, tbh, w_len):
    # x_ref   : (tm, C)              f32   input rows (tm = tbh * w_len pixels)
    # w_ref   : (C, N)               bf16  expand weight, N = ds*ds*c_out = ds*C
    # wgs_ref : (C, G)               bf16  per-group column means of w (G = ds*ds)
    # gsum_ref: (N, G)               f32   group-sum matrix / c_out
    # g_ref   : (1, ds*c_out)        f32   LayerNorm gamma tiled over the p2 groups
    # b_ref   : (1, ds*c_out)        f32   LayerNorm beta  tiled over the p2 groups
    # o_ref   : (tbh, ds, w_len, ds*c_out)  pixel-shuffled, normalized output block
    C = ds * c_out
    xb = x_ref[...].astype(jnp.bfloat16)                                      # in-register cast
    y = jnp.dot(xb, w_ref[...], preferred_element_type=jnp.float32)          # (tm, N) f32
    gm = jnp.dot(xb, wgs_ref[...], preferred_element_type=jnp.float32)       # (tm, G) group means
    ge2 = jnp.dot(y * y, gsum_ref[...], preferred_element_type=jnp.float32)  # (tm, G) E[y^2]
    var = jnp.maximum(ge2 - gm * gm, 0.0)                                    # clamp cancellation
    inv = lax.rsqrt(var + eps)                                               # rsqrt on (tm, G) only
    gamma = g_ref[...]
    beta = b_ref[...]
    for p1 in range(ds):                        # static python loop, ds is tiny (2 or 4)
        parts = []
        for p2 in range(ds):
            gidx = p1 * ds + p2
            yg = y[:, gidx * c_out:(gidx + 1) * c_out]                       # (tm, c_out)
            parts.append((yg - gm[:, gidx:gidx + 1]) * inv[:, gidx:gidx + 1])
        slab = jnp.concatenate(parts, axis=-1) * gamma + beta                # (tm, C)
        # (tbh*w_len, C) -> (tbh, w_len, C) is layout-free since w_len % 8 == 0.
        o_ref[:, p1, :, :] = slab.reshape(tbh, w_len, C).astype(o_ref.dtype)


def _pick_tiling(bh, w_len, C, N, out_bytes, max_rows, budget, vmem_cap):
    """Largest (b,h)-row tile fitting the VMEM budget; keep grid >= 2 when possible."""
    def est(rows):
        return (C * N * 2 + C * 16 + N * 16 + 4 * C * 8        # resident weights / vectors
                + 2 * rows * C * 4                               # input double-buffer (f32)
                + 2 * rows * N * out_bytes                       # output double-buffer
                + 4 * rows * N * 4)                              # f32 temporaries (y, y*y, slab)

    rows_cap = max_rows
    while rows_cap > w_len and est(rows_cap) > budget:
        rows_cap //= 2

    tbh = 1
    for d in range(1, bh + 1):                                   # largest divisor within cap
        if bh % d == 0 and d * w_len <= rows_cap:
            tbh = d
    if bh >= 2 and tbh == bh:                                    # >= 2 grid steps for v7x's 2 TCs
        for d in range(bh // 2, 0, -1):
            if bh % d == 0:
                tbh = d
                break

    vmem = int(min(max(est(tbh * w_len) * 5 // 4, 32 * 1024 * 1024), vmem_cap * 3 // 4))
    return tbh, vmem


def patch_expand_2d(x, w, gamma, beta, *, dim_scale=2, eps=1e-5,
                    out_dtype=jnp.float32, max_rows=1024):
    """PatchExpand2D forward.  x: (B,H,W,C), w: (C, dim_scale*C),
    gamma/beta: (C // dim_scale,).  Returns (B, ds*H, ds*W, C // ds).
    Set out_dtype=jnp.bfloat16 if the consumer accepts bf16 (halves writeback)."""
    B, H, W, C = x.shape
    ds = dim_scale
    c_out = C // ds
    N = ds * C                     # expanded channels = ds*ds*c_out
    G = ds * ds
    BH = B * H

    # Pad W to a sublane multiple only if needed (uncommon); padded pixels are
    # sliced off after the kernel and never contaminate valid rows (per-row LN).
    Wp = ((W + 7) // 8) * 8
    if Wp != W:
        x = jnp.pad(x, ((0, 0), (0, 0), (0, Wp - W), (0, 0)))
    x2 = x.reshape(BH * Wp, C)                       # free reshape, stays f32

    try:
        vmem_cap = int(pltpu.get_tpu_info().vmem_capacity_bytes)
    except Exception:                                # safe fallback (covers v7x's 64 MiB)
        vmem_cap = 64 * 1024 * 1024
    tbh, vmem_limit = _pick_tiling(BH, Wp, C, N, jnp.dtype(out_dtype).itemsize,
                                   max_rows, vmem_cap // 3, vmem_cap)
    tm = tbh * Wp

    # One-time tiny host-side weight prep (weights stay resident in VMEM).
    w_bf = w.astype(jnp.bfloat16)                                              # (C, N)
    wgs_bf = jnp.mean(w.reshape(C, G, c_out), axis=-1).astype(jnp.bfloat16)    # (C, G)
    gsum = jnp.repeat(jnp.eye(G, dtype=jnp.float32), c_out, axis=0) / c_out    # (N, G) f32
    gamma_slab = jnp.tile(gamma.astype(jnp.float32), ds).reshape(1, C)
    beta_slab = jnp.tile(beta.astype(jnp.float32), ds).reshape(1, C)

    grid = (BH // tbh,)
    out4 = pl.pallas_call(
        functools.partial(_expand_shuffle_ln_kernel, eps=eps, ds=ds,
                          c_out=c_out, tbh=tbh, w_len=Wp),
        grid=grid,
        in_specs=[
            pl.BlockSpec((tm, C), lambda i: (i, 0)),        # row tile (f32, cast in-kernel)
            pl.BlockSpec((C, N), lambda i: (0, 0)),         # expand weight (resident)
            pl.BlockSpec((C, G), lambda i: (0, 0)),         # folded group-mean weight
            pl.BlockSpec((N, G), lambda i: (0, 0)),         # group-sum matrix
            pl.BlockSpec((1, C), lambda i: (0, 0)),         # gamma (tiled over p2 groups)
            pl.BlockSpec((1, C), lambda i: (0, 0)),         # beta
        ],
        out_specs=pl.BlockSpec((tbh, ds, Wp, C), lambda i: (i, 0, 0, 0)),
        out_shape=jax.ShapeDtypeStruct((BH, ds, Wp, C), out_dtype),
        compiler_params=pltpu.CompilerParams(
            dimension_semantics=("parallel",),              # independent row tiles -> megacore
            vmem_limit_bytes=vmem_limit,
        ),
    )(x2, w_bf, wgs_bf, gsum, gamma_slab, beta_slab)

    # Fused pixel-shuffle: (BH, ds, Wp, C) is already (b,h,p1,w,p2,c) order -> free reshape.
    out = out4.reshape(B, H, ds, Wp, ds, c_out)
    if Wp != W:
        out = out[:, :, :, :W, :, :]
    return out.reshape(B, H * ds, W * ds, c_out)


def patch_expand_2d_reference(x, w, gamma, beta, *, dim_scale=2, eps=1e-5):
    """Pure-JAX f32 reference matching the PyTorch module."""
    B, H, W, C = x.shape
    ds = dim_scale
    c_out = C // ds
    y = jnp.einsum('bhwc,cn->bhwn', x, w)
    y = y.reshape(B, H, W, ds, ds, c_out)
    y = jnp.transpose(y, (0, 1, 3, 2, 4, 5)).reshape(B, H * ds, W * ds, c_out)
    mu = jnp.mean(y, axis=-1, keepdims=True)
    var = jnp.mean((y - mu) ** 2, axis=-1, keepdims=True)
    return (y - mu) * lax.rsqrt(var + eps) * gamma + beta


if __name__ == "__main__":
    B, H, W, dim = 2, 8, 8, 64
    dim_scale = 2
    c_out = dim // dim_scale

    key = jax.random.PRNGKey(0)
    kx, kw, kg, kb = jax.random.split(key, 4)
    x = jax.random.normal(kx, (B, H, W, dim), dtype=jnp.float32)
    w = jax.random.normal(kw, (dim, dim_scale * dim), dtype=jnp.float32) / jnp.sqrt(dim)
    gamma = 1.0 + 0.1 * jax.random.normal(kg, (c_out,), dtype=jnp.float32)
    beta = 0.1 * jax.random.normal(kb, (c_out,), dtype=jnp.float32)

    fwd = jax.jit(functools.partial(patch_expand_2d, dim_scale=dim_scale))
    out = jax.block_until_ready(fwd(x, w, gamma, beta))

    assert out.shape == (B, H * dim_scale, W * dim_scale, c_out), out.shape
    assert bool(jnp.all(jnp.isfinite(out)))

    ref = patch_expand_2d_reference(x, w, gamma, beta, dim_scale=dim_scale)
    max_err = float(jnp.max(jnp.abs(out - ref)))
    assert max_err < 5e-2, f"max abs err vs f32 reference: {max_err}"

    print("KERNEL_OK")
</pallas_src>

<mosaic_0001>
module attributes {stable_mosaic.version = 11 : i64} {
  func.func @_expand_shuffle_ln_kernel(%arg0: i32, %arg1: memref<64x64xf32, #tpu.memory_space<vmem>>, %arg2: memref<64x128xbf16, #tpu.memory_space<vmem>>, %arg3: memref<64x4xbf16, #tpu.memory_space<vmem>>, %arg4: memref<128x4xf32, #tpu.memory_space<vmem>>, %arg5: memref<1x64xf32, #tpu.memory_space<vmem>>, %arg6: memref<1x64xf32, #tpu.memory_space<vmem>>, %arg7: memref<8x2x8x64xf32, #tpu.memory_space<vmem>>) attributes {dimension_semantics = [#tpu.dimension_semantics<parallel>], iteration_bounds = array<i64: 2>, scalar_prefetch = 0 : i64, scratch_operands = 0 : i64, tpu.core_type = #tpu.core_type<tc>, window_params = [{transform_indices = @transform_0, window_bounds = array<i64: 64, 64>}, {pipeline_mode = #tpu.pipeline_mode<synchronous>, transform_indices = @transform_1, window_bounds = array<i64: 64, 128>}, {pipeline_mode = #tpu.pipeline_mode<synchronous>, transform_indices = @transform_2, window_bounds = array<i64: 64, 4>}, {pipeline_mode = #tpu.pipeline_mode<synchronous>, transform_indices = @transform_3, window_bounds = array<i64: 128, 4>}, {pipeline_mode = #tpu.pipeline_mode<synchronous>, transform_indices = @transform_4, window_bounds = array<i64: 1, 64>}, {pipeline_mode = #tpu.pipeline_mode<synchronous>, transform_indices = @transform_5, window_bounds = array<i64: 1, 64>}, {transform_indices = @transform_6, window_bounds = array<i64: 8, 2, 8, 64>}]} {
    %c0 = arith.constant 0 : index
    %c0_0 = arith.constant 0 : index
    %0 = vector.load %arg1[%c0, %c0_0] : memref<64x64xf32, #tpu.memory_space<vmem>>, vector<64x64xf32>
    %1 = arith.truncf %0 : vector<64x64xf32> to vector<64x64xbf16>
    %c0_1 = arith.constant 0 : index
    %c0_2 = arith.constant 0 : index
    %2 = vector.load %arg2[%c0_1, %c0_2] : memref<64x128xbf16, #tpu.memory_space<vmem>>, vector<64x128xbf16>
    %cst = arith.constant dense<0.000000e+00> : vector<64x128xf32>
    %3 = tpu.matmul %1, %2, %cst {dimension_numbers = #tpu.dot_dimension_numbers<[1], [0], [0], [1], [0, 0, 1, 1], [], []>} : vector<64x64xbf16>, vector<64x128xbf16>, vector<64x128xf32> -> vector<64x128xf32>
    %c0_3 = arith.constant 0 : index
    %c0_4 = arith.constant 0 : index
    %4 = vector.load %arg3[%c0_3, %c0_4] : memref<64x4xbf16, #tpu.memory_space<vmem>>, vector<64x4xbf16>
    %cst_5 = arith.constant dense<0.000000e+00> : vector<64x4xf32>
    %5 = tpu.matmul %1, %4, %cst_5 {dimension_numbers = #tpu.dot_dimension_numbers<[1], [0], [0], [1], [0, 0, 1, 1], [], []>} : vector<64x64xbf16>, vector<64x4xbf16>, vector<64x4xf32> -> vector<64x4xf32>
    %6 = arith.mulf %3, %3 : vector<64x128xf32>
    %c0_6 = arith.constant 0 : index
    %c0_7 = arith.constant 0 : index
    %7 = vector.load %arg4[%c0_6, %c0_7] : memref<128x4xf32, #tpu.memory_space<vmem>>, vector<128x4xf32>
    %cst_8 = arith.constant dense<0.000000e+00> : vector<64x4xf32>
    %8 = tpu.matmul %6, %7, %cst_8 {dimension_numbers = #tpu.dot_dimension_numbers<[1], [0], [0], [1], [0, 0, 1, 1], [], []>} : vector<64x128xf32>, vector<128x4xf32>, vector<64x4xf32> -> vector<64x4xf32>
    %9 = arith.mulf %5, %5 : vector<64x4xf32>
    %10 = arith.subf %8, %9 : vector<64x4xf32>
    %cst_9 = arith.constant 0.000000e+00 : f32
    %11 = vector.broadcast %cst_9 : f32 to vector<64x4xf32>
    %12 = arith.maximumf %10, %11 : vector<64x4xf32>
    %cst_10 = arith.constant 9.99999974E-6 : f32
    %13 = vector.broadcast %cst_10 : f32 to vector<64x4xf32>
    %14 = arith.addf %12, %13 : vector<64x4xf32>
    %15 = math.rsqrt %14 : vector<64x4xf32>
    %c0_11 = arith.constant 0 : index
    %c0_12 = arith.constant 0 : index
    %16 = vector.load %arg5[%c0_11, %c0_12] : memref<1x64xf32, #tpu.memory_space<vmem>>, vector<1x64xf32>
    %c0_13 = arith.constant 0 : index
    %c0_14 = arith.constant 0 : index
    %17 = vector.load %arg6[%c0_13, %c0_14] : memref<1x64xf32, #tpu.memory_space<vmem>>, vector<1x64xf32>
    %18 = vector.extract_strided_slice %3 {offsets = [0, 0], sizes = [64, 32], strides = [1, 1]} : vector<64x128xf32> to vector<64x32xf32>
    %19 = vector.extract_strided_slice %5 {offsets = [0, 0], sizes = [64, 1], strides = [1, 1]} : vector<64x4xf32> to vector<64x1xf32>
    %20 = vector.broadcast %19 : vector<64x1xf32> to vector<64x32xf32>
    %21 = arith.subf %18, %20 : vector<64x32xf32>
    %22 = vector.extract_strided_slice %15 {offsets = [0, 0], sizes = [64, 1], strides = [1, 1]} : vector<64x4xf32> to vector<64x1xf32>
    %23 = vector.broadcast %22 : vector<64x1xf32> to vector<64x32xf32>
    %24 = arith.mulf %21, %23 : vector<64x32xf32>
    %25 = vector.extract_strided_slice %3 {offsets = [0, 32], sizes = [64, 32], strides = [1, 1]} : vector<64x128xf32> to vector<64x32xf32>
    %26 = vector.extract_strided_slice %5 {offsets = [0, 1], sizes = [64, 1], strides = [1, 1]} : vector<64x4xf32> to vector<64x1xf32>
    %27 = vector.broadcast %26 : vector<64x1xf32> to vector<64x32xf32>
    %28 = arith.subf %25, %27 : vector<64x32xf32>
    %29 = vector.extract_strided_slice %15 {offsets = [0, 1], sizes = [64, 1], strides = [1, 1]} : vector<64x4xf32> to vector<64x1xf32>
    %30 = vector.broadcast %29 : vector<64x1xf32> to vector<64x32xf32>
    %31 = arith.mulf %28, %30 : vector<64x32xf32>
    %32 = tpu.concatenate %24, %31 in 1 : vector<64x32xf32>, vector<64x32xf32> -> vector<64x64xf32>
    %33 = vector.broadcast %16 : vector<1x64xf32> to vector<64x64xf32>
    %34 = arith.mulf %32, %33 : vector<64x64xf32>
    %35 = vector.broadcast %17 : vector<1x64xf32> to vector<64x64xf32>
    %36 = arith.addf %34, %35 : vector<64x64xf32>
    %37 = vector.shape_cast %36 : vector<64x64xf32> to vector<8x8x64xf32>
    %c0_15 = arith.constant 0 : index
    %c0_16 = arith.constant 0 : index
    %c0_17 = arith.constant 0 : index
    %c0_18 = arith.constant 0 : index
    %38 = vector.load %arg7[%c0_15, %c0_16, %c0_17, %c0_18] : memref<8x2x8x64xf32, #tpu.memory_space<vmem>>, vector<8x1x8x64xf32>
    %39 = vector.shape_cast %38 : vector<8x1x8x64xf32> to vector<8x8x64xf32>
    %40 = vector.shape_cast %37 : vector<8x8x64xf32> to vector<8x1x8x64xf32>
    tpu.vector_store %arg7[%c0_15, %c0_16, %c0_17, %c0_18], %40 {strides = array<i32>} : memref<8x2x8x64xf32, #tpu.memory_space<vmem>>, vector<8x1x8x64xf32>,
    %41 = vector.extract_strided_slice %3 {offsets = [0, 64], sizes = [64, 32], strides = [1, 1]} : vector<64x128xf32> to vector<64x32xf32>
    %42 = vector.extract_strided_slice %5 {offsets = [0, 2], sizes = [64, 1], strides = [1, 1]} : vector<64x4xf32> to vector<64x1xf32>
    %43 = vector.broadcast %42 : vector<64x1xf32> to vector<64x32xf32>
    %44 = arith.subf %41, %43 : vector<64x32xf32>
    %45 = vector.extract_strided_slice %15 {offsets = [0, 2], sizes = [64, 1], strides = [1, 1]} : vector<64x4xf32> to vector<64x1xf32>
    %46 = vector.broadcast %45 : vector<64x1xf32> to vector<64x32xf32>
    %47 = arith.mulf %44, %46 : vector<64x32xf32>
    %48 = vector.extract_strided_slice %3 {offsets = [0, 96], sizes = [64, 32], strides = [1, 1]} : vector<64x128xf32> to vector<64x32xf32>
    %49 = vector.extract_strided_slice %5 {offsets = [0, 3], sizes = [64, 1], strides = [1, 1]} : vector<64x4xf32> to vector<64x1xf32>
    %50 = vector.broadcast %49 : vector<64x1xf32> to vector<64x32xf32>
    %51 = arith.subf %48, %50 : vector<64x32xf32>
    %52 = vector.extract_strided_slice %15 {offsets = [0, 3], sizes = [64, 1], strides = [1, 1]} : vector<64x4xf32> to vector<64x1xf32>
    %53 = vector.broadcast %52 : vector<64x1xf32> to vector<64x32xf32>
    %54 = arith.mulf %51, %53 : vector<64x32xf32>
    %55 = tpu.concatenate %47, %54 in 1 : vector<64x32xf32>, vector<64x32xf32> -> vector<64x64xf32>
    %56 = vector.broadcast %16 : vector<1x64xf32> to vector<64x64xf32>
    %57 = arith.mulf %55, %56 : vector<64x64xf32>
    %58 = vector.broadcast %17 : vector<1x64xf32> to vector<64x64xf32>
    %59 = arith.addf %57, %58 : vector<64x64xf32>
    %60 = vector.shape_cast %59 : vector<64x64xf32> to vector<8x8x64xf32>
    %c0_19 = arith.constant 0 : index
    %c1 = arith.constant 1 : index
    %c0_20 = arith.constant 0 : index
    %c0_21 = arith.constant 0 : index
    %61 = vector.load %arg7[%c0_19, %c1, %c0_20, %c0_21] : memref<8x2x8x64xf32, #tpu.memory_space<vmem>>, vector<8x1x8x64xf32>
    %62 = vector.shape_cast %61 : vector<8x1x8x64xf32> to vector<8x8x64xf32>
    %63 = vector.shape_cast %60 : vector<8x8x64xf32> to vector<8x1x8x64xf32>
    tpu.vector_store %arg7[%c0_19, %c1, %c0_20, %c0_21], %63 {strides = array<i32>} : memref<8x2x8x64xf32, #tpu.memory_space<vmem>>, vector<8x1x8x64xf32>,
    return
  }
  func.func @transform_0(%arg0: i32) -> (i32, i32) {
    %c0_i32 = arith.constant 0 : i32
    %c0_i32_0 = arith.constant 0 : i32
    return %arg0, %c0_i32 : i32, i32
  }
  func.func @transform_1(%arg0: i32) -> (i32, i32) {
    %c0_i32 = arith.constant 0 : i32
    %c0_i32_0 = arith.constant 0 : i32
    %c0_i32_1 = arith.constant 0 : i32
    return %c0_i32, %c0_i32_0 : i32, i32
  }
  func.func @transform_2(%arg0: i32) -> (i32, i32) {
    %c0_i32 = arith.constant 0 : i32
    %c0_i32_0 = arith.constant 0 : i32
    %c0_i32_1 = arith.constant 0 : i32
    return %c0_i32, %c0_i32_0 : i32, i32
  }
  func.func @transform_3(%arg0: i32) -> (i32, i32) {
    %c0_i32 = arith.constant 0 : i32
    %c0_i32_0 = arith.constant 0 : i32
    %c0_i32_1 = arith.constant 0 : i32
    return %c0_i32, %c0_i32_0 : i32, i32
  }
  func.func @transform_4(%arg0: i32) -> (i32, i32) {
    %c0_i32 = arith.constant 0 : i32
    %c0_i32_0 = arith.constant 0 : i32
    %c0_i32_1 = arith.constant 0 : i32
    return %c0_i32, %c0_i32_0 : i32, i32
  }
  func.func @transform_5(%arg0: i32) -> (i32, i32) {
    %c0_i32 = arith.constant 0 : i32
    %c0_i32_0 = arith.constant 0 : i32
    %c0_i32_1 = arith.constant 0 : i32
    return %c0_i32, %c0_i32_0 : i32, i32
  }
  func.func @transform_6(%arg0: i32) -> (i32, i32, i32, i32) {
    %c0_i32 = arith.constant 0 : i32
    %c0_i32_0 = arith.constant 0 : i32
    %c0_i32_1 = arith.constant 0 : i32
    %c0_i32_2 = arith.constant 0 : i32
    return %arg0, %c0_i32, %c0_i32_0, %c0_i32_1 : i32, i32, i32, i32
  }
}

</mosaic_0001>

<llo_original>
// kernel: tile.13
$region0: #{tile.13}
  #allocation0 [shape = 's32[1]{0}', space=sflag, size = 0x4, scoped, tag = 'scoped memory for tile.13']
  %s0 = inlined_call_operand.vmem [shape: f32[32], index: 0, kind: input, shape index: {}]
  %s1 = inlined_call_operand.vmem [shape: f32[2,32], index: 1, kind: output, shape index: {}]
  // Predicated region
  $region2: #{tile.13} parent=0 // pred_check
    _
  $region3: #{tile.13} parent=0 // pred_check_branch
    %3 = sbr.rel (0) target = $region5
  $region4: #{tile.13} parent=0 // pred_region
    _
  $region5: #{tile.13} parent=0 // pred_fallthru
    _
  %v4 = vld [vmem:[%s0] ss:$0 sm:$0xff]
  %5 = vst [vmem:[%s1] sm:$0x3] %v4

// kernel: tile.14
$region0: #{tile.14}
  %s0 = inlined_call_operand.vmem [shape: f32[2,32], index: 0, kind: input, shape index: {}]
  %s1 = inlined_call_operand.vmem [shape: f32[1,64], index: 1, kind: output, shape index: {}]
  $region1: #{tile.14} parent=0
    #allocation0 [shape = 'u8[4096]{0}', space=vmem, size = 0x1000, scoped, tag = 'scoped mem for output reshape']
    #allocation1 [shape = 'u8[4096]{0}', space=vmem, size = 0x1000, scoped, tag = 'scoped mem for input reshape']
    %s3 = sshllo.u32 0, 2
    %v4 = vld [vmem:[%s0] sm:%s3]
    %5 = vst [vmem:[#allocation1] sm:%s3] %v4
    %v6 = vld [vmem:[#allocation1] sm:$0x1]
    %vm7 = vcmask 261120
    %8 = vst.msk [vmem:[#allocation0] sm:$0x1] %vm7, %v6
    %s9 = scalar_lea.vmem [#allocation1], 1
    %v10 = vld [vmem:[%s9] sm:$0x1]
    %11 = vrot.lane.b32.xlu0 %v10, 32
    %v12 = vpop.permute.xlu0 %11
    %vm13 = vcmask 523520
    %14 = vst.msk [vmem:[#allocation0] sm:$0x1] %vm13, %v12
    %s16 = sshllo.u32 0, 1
    %v18 = vld [vmem:[#allocation0] sm:%s16]
    %s19 = sshllo.u32 0, 1
    %20 = vst [vmem:[%s1] sm:%s19] %v18

// kernel: patch_expand_2d.1
$region0: #{patch_expand_2d.1}
  #allocation0 [shape = 'u32[]', space=smem, size = 0x4, offset = 0x4, fixed_abs, tag = 'smem constant byte address 0x4 - core index']
  #allocation1 [shape = 'u32[144,128]{1,0:T(1,128)}', space=vmem, size = 0x12000, scoped, tag = 'internal scratch']
  %s0 = inlined_call_operand.vmem [shape: f32[128,64], index: 0, kind: input, shape index: {}]
  %s1 = inlined_call_operand.vmem [shape: bf16[64,128], index: 1, kind: input, shape index: {}]
  %s2 = inlined_call_operand.vmem [shape: bf16[64,4], index: 2, kind: input, shape index: {}]
  %s3 = inlined_call_operand.vmem [shape: f32[128,4], index: 3, kind: input, shape index: {}]
  %s4 = inlined_call_operand.vmem [shape: f32[1,64], index: 4, kind: input, shape index: {}]
  %s5 = inlined_call_operand.vmem [shape: f32[1,64], index: 5, kind: input, shape index: {}]
  %s6 = inlined_call_operand.vmem [shape: f32[16,2,8,64], index: 6, kind: output, shape index: {}]
  %s7 = sld [smem:[#allocation0]]
  $region57: #{patch_expand_2d.1} parent=0
    _
  %s9 = ssub.s32 1, %s7
  %s10 = scalar_select 0, %s9, %s7
  loop: start=0, step=1, limit=4
  $region2: #{patch_expand_2d.1} parent=0 // loop_pre_header
    _
  $region3: #{patch_expand_2d.1} parent=0 // loop_header
    %s12 = sphi 0, %s16
    %p13 = scmp.ge.s32.totalorder %s12, 4
    %s22 = sphi 0, %s24
    %s25 = sphi 0, %s22
    %s26 = sphi 0, %s25
    %s42 = sphi 0, %s26
    %s46 = sphi 0, %s46
    %s48 = sphi 0, %s46
    %s49 = sphi 0, %s48
    %s63 = sphi 0, %s49
    %s67 = sphi 0, %s67
    %s69 = sphi 0, %s67
    %s70 = sphi 0, %s69
    %s84 = sphi 0, %s70
    %s88 = sphi 0, %s88
    %s90 = sphi 0, %s88
    %s91 = sphi 0, %s90
    %s105 = sphi 0, %s91
    %s109 = sphi 0, %s109
    %s111 = sphi 0, %s109
    %s112 = sphi 0, %s111
    %s126 = sphi 0, %s112
    %s130 = sphi 0, %s130
    %s132 = sphi 0, %s130
    %s133 = sphi 0, %s132
    %s147 = sphi 0, %s133
    %s153 = sphi 0, %s155
    %s156 = sphi 0, %s153
    %s157 = sphi 0, %s156
    %s173 = sphi 0, %s157
  $region4: #{patch_expand_2d.1} parent=0 // loop_header_branch
    %15 = sbr.rel (%p13) target = $region8
  $region5: #{patch_expand_2d.1} parent=0 // loop_body
    %s17 = ssub.s32 %s12, 1
    %s18 = ssub.s32 %s12, 2
    %s19 = sadd.s32 %s12, 1
    %s20 = ssub.s32 %s12, %s19
    %p21 = scmp.eq.s32.totalorder %s20, 0
    %s23 = sadd.s32 %s22, 1
    %s24 = scalar_select %p21, %s22, %s23
    %p27 = pneg %p21
    %p28 = scmp.eq.s32.totalorder %s12, 1
    %p29 = por %p27, %p28
    %p30 = scmp.ne.s32.totalorder %s22, %s25
    %p31 = scmp.eq.s32.totalorder %s12, 0
    %p32 = por %p30, %p31
    %p33 = scmp.ne.s32.totalorder %s22, %s25
    %p34 = scmp.eq.s32.totalorder %s17, 1
    %p35 = por %p33, %p34
    %p36 = scmp.ne.s32.totalorder %s25, %s26
    %p37 = scmp.eq.s32.totalorder %s17, 0
    %p38 = por %p36, %p37
    %p39 = scmp.ne.s32.totalorder %s25, %s26
    %p40 = scmp.eq.s32.totalorder %s18, 1
    %p41 = por %p39, %p40
    %p43 = scmp.ne.s32.totalorder %s26, %s42
    %p44 = scmp.eq.s32.totalorder %s18, 0
    %p45 = por %p43, %p44
    %s47 = sadd.s32 %s46, 1
    %p50 = scmp.eq.s32.totalorder %s12, 1
    %p51 = scmp.ne.s32.totalorder %s46, %s48
    %p52 = scmp.eq.s32.totalorder %s12, 0
    %p53 = por %p51, %p52
    %p54 = scmp.ne.s32.totalorder %s46, %s48
    %p55 = scmp.eq.s32.totalorder %s17, 1
    %p56 = por %p54, %p55
    %p57 = scmp.ne.s32.totalorder %s48, %s49
    %p58 = scmp.eq.s32.totalorder %s17, 0
    %p59 = por %p57, %p58
    %p60 = scmp.ne.s32.totalorder %s48, %s49
    %p61 = scmp.eq.s32.totalorder %s18, 1
    %p62 = por %p60, %p61
    %p64 = scmp.ne.s32.totalorder %s49, %s63
    %p65 = scmp.eq.s32.totalorder %s18, 0
    %p66 = por %p64, %p65
    %s68 = sadd.s32 %s67, 1
    %p71 = scmp.eq.s32.totalorder %s12, 1
    %p72 = scmp.ne.s32.totalorder %s67, %s69
    %p73 = scmp.eq.s32.totalorder %s12, 0
    %p74 = por %p72, %p73
    %p75 = scmp.ne.s32.totalorder %s67, %s69
    %p76 = scmp.eq.s32.totalorder %s17, 1
    %p77 = por %p75, %p76
    %p78 = scmp.ne.s32.totalorder %s69, %s70
    %p79 = scmp.eq.s32.totalorder %s17, 0
    %p80 = por %p78, %p79
    %p81 = scmp.ne.s32.totalorder %s69, %s70
    %p82 = scmp.eq.s32.totalorder %s18, 1
    %p83 = por %p81, %p82
    %p85 = scmp.ne.s32.totalorder %s70, %s84
    %p86 = scmp.eq.s32.totalorder %s18, 0
    %p87 = por %p85, %p86
    %s89 = sadd.s32 %s88, 1
    %p92 = scmp.eq.s32.totalorder %s12, 1
    %p93 = scmp.ne.s32.totalorder %s88, %s90
    %p94 = scmp.eq.s32.totalorder %s12, 0
    %p95 = por %p93, %p94
    %p96 = scmp.ne.s32.totalorder %s88, %s90
    %p97 = scmp.eq.s32.totalorder %s17, 1
    %p98 = por %p96, %p97
    %p99 = scmp.ne.s32.totalorder %s90, %s91
    %p100 = scmp.eq.s32.totalorder %s17, 0
    %p101 = por %p99, %p100
    %p102 = scmp.ne.s32.totalorder %s90, %s91
    %p103 = scmp.eq.s32.totalorder %s18, 1
    %p104 = por %p102, %p103
    %p106 = scmp.ne.s32.totalorder %s91, %s105
    %p107 = scmp.eq.s32.totalorder %s18, 0
    %p108 = por %p106, %p107
    %s110 = sadd.s32 %s109, 1
    %p113 = scmp.eq.s32.totalorder %s12, 1
    %p114 = scmp.ne.s32.totalorder %s109, %s111
    %p115 = scmp.eq.s32.totalorder %s12, 0
    %p116 = por %p114, %p115
    %p117 = scmp.ne.s32.totalorder %s109, %s111
    %p118 = scmp.eq.s32.totalorder %s17, 1
    %p119 = por %p117, %p118
    %p120 = scmp.ne.s32.totalorder %s111, %s112
    %p121 = scmp.eq.s32.totalorder %s17, 0
    %p122 = por %p120, %p121
    %p123 = scmp.ne.s32.totalorder %s111, %s112
    %p124 = scmp.eq.s32.totalorder %s18, 1
    %p125 = por %p123, %p124
    %p127 = scmp.ne.s32.totalorder %s112, %s126
    %p128 = scmp.eq.s32.totalorder %s18, 0
    %p129 = por %p127, %p128
    %s131 = sadd.s32 %s130, 1
    %p134 = scmp.eq.s32.totalorder %s12, 1
    %p135 = scmp.ne.s32.totalorder %s130, %s132
    %p136 = scmp.eq.s32.totalorder %s12, 0
    %p137 = por %p135, %p136
    %p138 = scmp.ne.s32.totalorder %s130, %s132
    %p139 = scmp.eq.s32.totalorder %s17, 1
    %p140 = por %p138, %p139
    %p141 = scmp.ne.s32.totalorder %s132, %s133
    %p142 = scmp.eq.s32.totalorder %s17, 0
    %p143 = por %p141, %p142
    %p144 = scmp.ne.s32.totalorder %s132, %s133
    %p145 = scmp.eq.s32.totalorder %s18, 1
    %p146 = por %p144, %p145
    %p148 = scmp.ne.s32.totalorder %s133, %s147
    %p149 = scmp.eq.s32.totalorder %s18, 0
    %p150 = por %p148, %p149
    %s151 = ssub.s32 %s12, %s19
    %p152 = scmp.eq.s32.totalorder %s151, 0
    %s154 = sadd.s32 %s153, 1
    %s155 = scalar_select %p152, %s153, %s154
    %p158 = pneg %p152
    %p159 = scmp.eq.s32.totalorder %s12, 1
    %p160 = por %p158, %p159
    %p161 = scmp.ne.s32.totalorder %s153, %s156
    %p162 = scmp.eq.s32.totalorder %s12, 0
    %p163 = por %p161, %p162
    %p164 = scmp.ne.s32.totalorder %s153, %s156
    %p165 = scmp.eq.s32.totalorder %s17, 1
    %p166 = por %p164, %p165
    %p167 = scmp.ne.s32.totalorder %s156, %s157
    %p168 = scmp.eq.s32.totalorder %s17, 0
    %p169 = por %p167, %p168
    %p170 = scmp.ne.s32.totalorder %s156, %s157
    %p171 = scmp.eq.s32.totalorder %s18, 1
    %p172 = por %p170, %p171
    %p174 = scmp.ne.s32.totalorder %s157, %s173
    %p175 = scmp.eq.s32.totalorder %s18, 0
    %p176 = por %p174, %p175
    %p177 = scmp.le.s32.totalorder 1, %s12
    %p178 = scmp.lt.s32.totalorder %s12, 3
    %p179 = pnand %p177, %p178
    %p180 = pneg %p179
    // Predicated region
    $region9: #{patch_expand_2d.1} parent=5 // pred_check
      _
    $region10: #{patch_expand_2d.1} parent=5 // pred_check_branch
      %182 = sbr.rel (%p179) target = $region12
    $region11: #{patch_expand_2d.1} parent=5 // pred_region
      %s183 = ssub.s32 %s12, 1
      // Predicated region
      $region13: #{patch_expand_2d.1} parent=11 // pred_check
        %p184 = pneg %p59
      $region14: #{patch_expand_2d.1} parent=11 // pred_check_branch
        %186 = sbr.rel (%p184) target = $region16
      $region15: #{patch_expand_2d.1} parent=11 // pred_region
        _
      $region16: #{patch_expand_2d.1} parent=11 // pred_fallthru
        _
      // Predicated region
      $region17: #{patch_expand_2d.1} parent=11 // pred_check
        %p187 = pneg %p80
      $region18: #{patch_expand_2d.1} parent=11 // pred_check_branch
        %189 = sbr.rel (%p187) target = $region20
      $region19: #{patch_expand_2d.1} parent=11 // pred_region
        _
      $region20: #{patch_expand_2d.1} parent=11 // pred_fallthru
        _
      // Predicated region
      $region21: #{patch_expand_2d.1} parent=11 // pred_check
        %p190 = pneg %p101
      $region22: #{patch_expand_2d.1} parent=11 // pred_check_branch
        %192 = sbr.rel (%p190) target = $region24
      $region23: #{patch_expand_2d.1} parent=11 // pred_region
        _
      $region24: #{patch_expand_2d.1} parent=11 // pred_fallthru
        _
      // Predicated region
      $region25: #{patch_expand_2d.1} parent=11 // pred_check
        %p193 = pneg %p122
      $region26: #{patch_expand_2d.1} parent=11 // pred_check_branch
        %195 = sbr.rel (%p193) target = $region28
      $region27: #{patch_expand_2d.1} parent=11 // pred_region
        _
      $region28: #{patch_expand_2d.1} parent=11 // pred_fallthru
        _
      // Predicated region
      $region29: #{patch_expand_2d.1} parent=11 // pred_check
        %p196 = pneg %p143
      $region30: #{patch_expand_2d.1} parent=11 // pred_check_branch
        %198 = sbr.rel (%p196) target = $region32
      $region31: #{patch_expand_2d.1} parent=11 // pred_region
        _
      $region32: #{patch_expand_2d.1} parent=11 // pred_fallthru
        _
    $region12: #{patch_expand_2d.1} parent=5 // pred_fallthru
      _
    %p199 = scmp.lt.s32.totalorder %s12, 2
    // Predicated region
    $region33: #{patch_expand_2d.1} parent=5 // pred_check
      %p200 = pneg %p199
    $region34: #{patch_expand_2d.1} parent=5 // pred_check_branch
      %202 = sbr.rel (%p200) target = $region36
    $region35: #{patch_expand_2d.1} parent=5 // pred_region
      // Predicated region
      $region37: #{patch_expand_2d.1} parent=35 // pred_check
        %p203 = pneg %p32
      $region38: #{patch_expand_2d.1} parent=35 // pred_check_branch
        %205 = sbr.rel (%p203) target = $region40
      $region39: #{patch_expand_2d.1} parent=35 // pred_region
        %s206 = smul.u32 8, %s12
        %p207 = scmp.lt.s32.totalorder %s206, 15
        %s208 = scalar_select %p207, %s206, 15
        %s209 = smul.addr %s208, 8
        %s210 = scalar_lea.vmem %s0, %s209
        %s211 = smul.u32 8, %s12
      $region40: #{patch_expand_2d.1} parent=35 // pred_fallthru
        _
    $region36: #{patch_expand_2d.1} parent=5 // pred_fallthru
      _
    %p212 = scmp.le.s32.totalorder 1, %s12
    %p213 = scmp.lt.s32.totalorder %s12, 3
    %p214 = pnand %p212, %p213
    %p215 = pneg %p214
    // Predicated region
    $region41: #{patch_expand_2d.1} parent=5 // pred_check
      _
    $region42: #{patch_expand_2d.1} parent=5 // pred_check_branch
      %217 = sbr.rel (%p214) target = $region44
    $region43: #{patch_expand_2d.1} parent=5 // pred_region
      %s218 = ssub.s32 %s12, 1
      %s219 = smul.u32 8, %s17
      %p220 = scmp.lt.s32.totalorder %s219, 15
      %s221 = scalar_select %p220, %s219, 15
      %s222 = smul.addr %s221, 8
      %s223 = scalar_lea.vmem %s0, %s222
      %p224 = pneg %p38
      %p225 = pneg %p35
      %p226 = pneg %p59
      %p227 = pneg %p56
      %p228 = pneg %p80
      %p229 = pneg %p77
      %p230 = pneg %p101
      %p231 = pneg %p98
      %p232 = pneg %p122
      %p233 = pneg %p119
      %p234 = pneg %p143
      %p235 = pneg %p140
      %p236 = pneg %p169
      %p237 = pneg %p166
      %s238 = smul.u32 8, %s17
      %p239 = scmp.lt.s32.totalorder %s238, 15
      %s240 = scalar_select %p239, %s238, 15
      %s241 = smul.addr %s240, 2
      %s242 = smul.addr %s241, 8
      %s243 = scalar_lea.vmem %s6, %s242
      %s244 = smul.u32 8, %s17
      %p245 = scmp.lt.s32.totalorder %s244, 15
      %s246 = scalar_select %p245, %s244, 15
      %s247 = smul.addr %s246, 8
      %s248 = scalar_lea.vmem %s0, %s247
      %s249 = smul.u32 8, %s17
      %s250 = smul.u32 8, %s17
      %p251 = scmp.lt.s32.totalorder %s250, 15
      %s252 = scalar_select %p251, %s250, 15
      %s253 = smul.addr %s252, 2
      %s254 = smul.addr %s253, 8
      %s255 = scalar_lea.vmem %s6, %s254
      %s256 = smul.u32 8, %s17
      %v258 = vld [vmem:[%s248] sm:$0xff]
      %v259 = vld [vmem:[%s248 + $0x8] sm:$0xff]
      %v260 = vld [vmem:[%s248 + $0x10] sm:$0xff]
      %v261 = vld [vmem:[%s248 + $0x18] sm:$0xff]
      %v262 = vld [vmem:[%s248 + $0x20] sm:$0xff]
      %v263 = vld [vmem:[%s248 + $0x28] sm:$0xff]
      %v264 = vld [vmem:[%s248 + $0x30] sm:$0xff]
      %v265 = vld [vmem:[%s248 + $0x38] sm:$0xff]
      %v266 = vpack.c.bf16 %v259, %v258
      %v267 = vpack.c.bf16 %v261, %v260
      %v268 = vpack.c.bf16 %v263, %v262
      %v269 = vpack.c.bf16 %v265, %v264
      %v270 = vld [vmem:[%s1] sm:$0xf]
      %v271 = vld [vmem:[%s1 + $0x4] sm:$0xf]
      %v272 = vld [vmem:[%s1 + $0x8] sm:$0xf]
      %v273 = vld [vmem:[%s1 + $0xc] sm:$0xf]
      %v274 = vld [vmem:[%s1 + $0x10] sm:$0xf]
      %v275 = vld [vmem:[%s1 + $0x14] sm:$0xf]
      %v276 = vld [vmem:[%s1 + $0x18] sm:$0xf]
      %v277 = vld [vmem:[%s1 + $0x1c] sm:$0xf]
      %v286 = vunpack.c.l.b16 %v270
      %v287 = vunpack.c.l.b16 %v271
      %v288 = vunpack.c.l.b16 %v272
      %v289 = vunpack.c.l.b16 %v273
      %v290 = vunpack.c.l.b16 %v274
      %v291 = vunpack.c.l.b16 %v275
      %v292 = vunpack.c.l.b16 %v276
      %v293 = vunpack.c.l.b16 %v277
      %v294 = vpack.c.b16 %v287, %v286
      %v295 = vpack.c.b16 %v289, %v288
      %v296 = vpack.c.b16 %v291, %v290
      %v297 = vpack.c.b16 %v293, %v292
      %vm302 = vcmask 523264
      %v304 = vsel %vm302, %v266, 0
      %v307 = vsel %vm302, %v267, 0
      %v310 = vsel %vm302, %v268, 0
      %v313 = vsel %vm302, %v269, 0
      %315 = vmatprep.subr.bf16.mxu0 0
      %316 = vmatpush1.bf16.msra.mxu0 %v294
      %317 = vmatprep.subr.bf16.mxu0 0
      %318 = vmatpush1.bf16.msra.mxu0 %v295
      %319 = vmatprep.subr.bf16.mxu0 0
      %320 = vmatpush1.bf16.msra.mxu0 %v296
      %321 = vmatprep.subr.bf16.mxu0 0
      %322 = vmatpush1.bf16.msra.mxu0 %v297
      %323 = vmatprep.subr.bf16.mxu0 0
      %324 = vmatpush1.bf16.msra.mxu0 0
      %325 = vmatprep.subr.bf16.mxu0 0
      %326 = vmatpush1.bf16.msra.mxu0 0
      %327 = vmatprep.subr.bf16.mxu0 0
      %328 = vmatpush1.bf16.msra.mxu0 0
      %329 = vmatprep.subr.bf16.mxu0 0
      %330 = vmatpush1.bf16.msra.mxu0 0
      %331 = vmatprep.subr.bf16.mxu0 0
      %332 = vmatpush1.bf16.msra.mxu0 0
      %333 = vmatprep.subr.bf16.mxu0 0
      %334 = vmatpush1.bf16.msra.mxu0 0
      %335 = vmatprep.subr.bf16.mxu0 0
      %336 = vmatpush1.bf16.msra.mxu0 0
      %337 = vmatprep.subr.bf16.mxu0 0
      %338 = vmatpush1.bf16.msra.mxu0 0
      %339 = vmatprep.subr.bf16.mxu0 0
      %340 = vmatpush1.bf16.msra.mxu0 0
      %341 = vmatprep.subr.bf16.mxu0 0
      %342 = vmatpush1.bf16.msra.mxu0 0
      %343 = vmatprep.subr.bf16.mxu0 0
      %344 = vmatpush1.bf16.msra.mxu0 0
      %345 = vmatprep.subr.bf16.mxu0 0
      %346 = vmatpush1.bf16.msra.mxu0 0
      %347 = vmatprep.mubr.bf16.mxu0 0
      %348 = vmatmul.mubr.bf16.gmra.mrb[0].mxu0 %v304
      %v349 = vpop.f32.mrb[0].mxu0
      %v350 = vadd.f32 0.0, %v349
      %v351 = vpop.f32.mrb[0].mxu0
      %v352 = vpop.f32.mrb[0].mxu0
      %v353 = vadd.f32 0.0, %v352
      %v354 = vpop.f32.mrb[0].mxu0
      %355 = vmatprep.mubr.bf16.mxu0 0
      %356 = vmatmul.mubr.bf16.gmra.mrb[0].mxu0 %v307
      %v357 = vpop.f32.mrb[0].mxu0
      %v358 = vadd.f32 0.0, %v357
      %v359 = vpop.f32.mrb[0].mxu0
      %v360 = vpop.f32.mrb[0].mxu0
      %v361 = vadd.f32 0.0, %v360
      %v362 = vpop.f32.mrb[0].mxu0
      %363 = vmatprep.mubr.bf16.mxu0 0
      %364 = vmatmul.mubr.bf16.gmra.mrb[0].mxu0 %v310
      %v365 = vpop.f32.mrb[0].mxu0
      %v366 = vadd.f32 0.0, %v365
      %v367 = vpop.f32.mrb[0].mxu0
      %v368 = vpop.f32.mrb[0].mxu0
      %v369 = vadd.f32 0.0, %v368
      %v370 = vpop.f32.mrb[0].mxu0
      %371 = vmatprep.mubr.bf16.mxu0 0
      %372 = vmatmul.mubr.bf16.gmra.mrb[0].mxu0 %v313
      %v373 = vpop.f32.mrb[0].mxu0
      %v374 = vadd.f32 0.0, %v373
      %v375 = vpop.f32.mrb[0].mxu0
      %v376 = vpop.f32.mrb[0].mxu0
      %v377 = vadd.f32 0.0, %v376
      %v378 = vpop.f32.mrb[0].mxu0
      %379 = vdwg.mxu0
      %v380 = vld [vmem:[%s2] sm:$0xf]
      %v381 = vld [vmem:[%s2 + $0x4] sm:$0xf]
      %v382 = vld [vmem:[%s2 + $0x8] sm:$0xf]
      %v383 = vld [vmem:[%s2 + $0xc] sm:$0xf]
      %v384 = vld [vmem:[%s2 + $0x10] sm:$0xf]
      %v385 = vld [vmem:[%s2 + $0x14] sm:$0xf]
      %v386 = vld [vmem:[%s2 + $0x18] sm:$0xf]
      %v387 = vld [vmem:[%s2 + $0x1c] sm:$0xf]
      %v396 = vunpack.c.l.b16 %v380
      %v397 = vunpack.c.l.b16 %v381
      %v398 = vunpack.c.l.b16 %v382
      %v399 = vunpack.c.l.b16 %v383
      %v400 = vunpack.c.l.b16 %v384
      %v401 = vunpack.c.l.b16 %v385
      %v402 = vunpack.c.l.b16 %v386
      %v403 = vunpack.c.l.b16 %v387
      %v404 = vpack.c.b16 %v397, %v396
      %v405 = vpack.c.b16 %v399, %v398
      %v406 = vpack.c.b16 %v401, %v400
      %v407 = vpack.c.b16 %v403, %v402
      %412 = vmatprep.subr.bf16.mxu0 0
      %413 = vmatpush1.bf16.msra.mxu0 %v404
      %414 = vmatprep.subr.bf16.mxu0 0
      %415 = vmatpush1.bf16.msra.mxu0 %v405
      %416 = vmatprep.subr.bf16.mxu0 0
      %417 = vmatpush1.bf16.msra.mxu0 %v406
      %418 = vmatprep.subr.bf16.mxu0 0
      %419 = vmatpush1.bf16.msra.mxu0 %v407
      %420 = vmatprep.subr.bf16.mxu0 0
      %421 = vmatpush1.bf16.msra.mxu0 0
      %422 = vmatprep.subr.bf16.mxu0 0
      %423 = vmatpush1.bf16.msra.mxu0 0
      %424 = vmatprep.subr.bf16.mxu0 0
      %425 = vmatpush1.bf16.msra.mxu0 0
      %426 = vmatprep.subr.bf16.mxu0 0
      %427 = vmatpush1.bf16.msra.mxu0 0
      %428 = vmatprep.subr.bf16.mxu0 0
      %429 = vmatpush1.bf16.msra.mxu0 0
      %430 = vmatprep.subr.bf16.mxu0 0
      %431 = vmatpush1.bf16.msra.mxu0 0
      %432 = vmatprep.subr.bf16.mxu0 0
      %433 = vmatpush1.bf16.msra.mxu0 0
      %434 = vmatprep.subr.bf16.mxu0 0
      %435 = vmatpush1.bf16.msra.mxu0 0
      %436 = vmatprep.subr.bf16.mxu0 0
      %437 = vmatpush1.bf16.msra.mxu0 0
      %438 = vmatprep.subr.bf16.mxu0 0
      %439 = vmatpush1.bf16.msra.mxu0 0
      %440 = vmatprep.subr.bf16.mxu0 0
      %441 = vmatpush1.bf16.msra.mxu0 0
      %442 = vmatprep.subr.bf16.mxu0 0
      %443 = vmatpush1.bf16.msra.mxu0 0
      %444 = vmatprep.mubr.bf16.mxu0 0
      %445 = vmatmul.mubr.bf16.gmra.mrb[0].mxu0 %v304
      %v446 = vpop.f32.mrb[0].mxu0
      %v447 = vadd.f32 0.0, %v446
      %v448 = vpop.f32.mrb[0].mxu0
      %v449 = vpop.f32.mrb[0].mxu0
      %v450 = vadd.f32 0.0, %v449
      %v451 = vpop.f32.mrb[0].mxu0
      %452 = vmatprep.mubr.bf16.mxu0 0
      %453 = vmatmul.mubr.bf16.gmra.mrb[0].mxu0 %v307
      %v454 = vpop.f32.mrb[0].mxu0
      %v455 = vadd.f32 0.0, %v454
      %v456 = vpop.f32.mrb[0].mxu0
      %v457 = vpop.f32.mrb[0].mxu0
      %v458 = vadd.f32 0.0, %v457
      %v459 = vpop.f32.mrb[0].mxu0
      %460 = vmatprep.mubr.bf16.mxu0 0
      %461 = vmatmul.mubr.bf16.gmra.mrb[0].mxu0 %v310
      %v462 = vpop.f32.mrb[0].mxu0
      %v463 = vadd.f32 0.0, %v462
      %v464 = vpop.f32.mrb[0].mxu0
      %v465 = vpop.f32.mrb[0].mxu0
      %v466 = vadd.f32 0.0, %v465
      %v467 = vpop.f32.mrb[0].mxu0
      %468 = vmatprep.mubr.bf16.mxu0 0
      %469 = vmatmul.mubr.bf16.gmra.mrb[0].mxu0 %v313
      %v470 = vpop.f32.mrb[0].mxu0
      %v471 = vadd.f32 0.0, %v470
      %v472 = vpop.f32.mrb[0].mxu0
      %v473 = vpop.f32.mrb[0].mxu0
      %v474 = vadd.f32 0.0, %v473
      %v475 = vpop.f32.mrb[0].mxu0
      %476 = vdwg.mxu0
      %v477 = vmul.f32 %v350, %v350
      %v478 = vmul.f32 %v353, %v353
      %v479 = vmul.f32 %v358, %v358
      %v480 = vmul.f32 %v361, %v361
      %v481 = vmul.f32 %v366, %v366
      %v482 = vmul.f32 %v369, %v369
      %v483 = vmul.f32 %v374, %v374
      %v484 = vmul.f32 %v377, %v377
      %v485 = vld [vmem:[%s3] sm:$0xff]
      %v486 = vld [vmem:[%s3 + $0x8] sm:$0xff]
      %v487 = vld [vmem:[%s3 + $0x10] sm:$0xff]
      %v488 = vld [vmem:[%s3 + $0x18] sm:$0xff]
      %v489 = vld [vmem:[%s3 + $0x20] sm:$0xff]
      %v490 = vld [vmem:[%s3 + $0x28] sm:$0xff]
      %v491 = vld [vmem:[%s3 + $0x30] sm:$0xff]
      %v492 = vld [vmem:[%s3 + $0x38] sm:$0xff]
      %v493 = vld [vmem:[%s3 + $0x40] sm:$0xff]
      %v494 = vld [vmem:[%s3 + $0x48] sm:$0xff]
      %v495 = vld [vmem:[%s3 + $0x50] sm:$0xff]
      %v496 = vld [vmem:[%s3 + $0x58] sm:$0xff]
      %v497 = vld [vmem:[%s3 + $0x60] sm:$0xff]
      %v498 = vld [vmem:[%s3 + $0x68] sm:$0xff]
      %v499 = vld [vmem:[%s3 + $0x70] sm:$0xff]
      %v500 = vld [vmem:[%s3 + $0x78] sm:$0xff]
      %501 = vmatprep.subr.mxu0 0.0
      %502 = vmatpush1.msra.mxu0 %v485
      %503 = vmatprep.subr.mxu0 0.0
      %504 = vmatpush1.msra.mxu0 %v486
      %505 = vmatprep.subr.mxu0 0.0
      %506 = vmatpush1.msra.mxu0 %v487
      %507 = vmatprep.subr.mxu0 0.0
      %508 = vmatpush1.msra.mxu0 %v488
      %509 = vmatprep.subr.mxu0 0.0
      %510 = vmatpush1.msra.mxu0 %v489
      %511 = vmatprep.subr.mxu0 0.0
      %512 = vmatpush1.msra.mxu0 %v490
      %513 = vmatprep.subr.mxu0 0.0
      %514 = vmatpush1.msra.mxu0 %v491
      %515 = vmatprep.subr.mxu0 0.0
      %516 = vmatpush1.msra.mxu0 %v492
      %517 = vmatprep.subr.mxu0 0.0
      %518 = vmatpush1.msra.mxu0 %v493
      %519 = vmatprep.subr.mxu0 0.0
      %520 = vmatpush1.msra.mxu0 %v494
      %521 = vmatprep.subr.mxu0 0.0
      %522 = vmatpush1.msra.mxu0 %v495
      %523 = vmatprep.subr.mxu0 0.0
      %524 = vmatpush1.msra.mxu0 %v496
      %525 = vmatprep.subr.mxu0 0.0
      %526 = vmatpush1.msra.mxu0 %v497
      %527 = vmatprep.subr.mxu0 0.0
      %528 = vmatpush1.msra.mxu0 %v498
      %529 = vmatprep.subr.mxu0 0.0
      %530 = vmatpush1.msra.mxu0 %v499
      %531 = vmatprep.subr.mxu0 0.0
      %532 = vmatpush1.msra.mxu0 %v500
      %533 = vmatprep.subr.mxu0 0.0
      %534 = vmatpush1.msra.mxu0 0.0
      %535 = vmatprep.subr.mxu0 0.0
      %536 = vmatpush1.msra.mxu0 0.0
      %537 = vmatprep.subr.mxu0 0.0
      %538 = vmatpush1.msra.mxu0 0.0
      %539 = vmatprep.subr.mxu0 0.0
      %540 = vmatpush1.msra.mxu0 0.0
      %541 = vmatprep.subr.mxu0 0.0
      %542 = vmatpush1.msra.mxu0 0.0
      %543 = vmatprep.subr.mxu0 0.0
      %544 = vmatpush1.msra.mxu0 0.0
      %545 = vmatprep.subr.mxu0 0.0
      %546 = vmatpush1.msra.mxu0 0.0
      %547 = vmatprep.subr.mxu0 0.0
      %548 = vmatpush1.msra.mxu0 0.0
      %549 = vmatprep.subr.mxu0 0.0
      %550 = vmatpush1.msra.mxu0 0.0
      %551 = vmatprep.subr.mxu0 0.0
      %552 = vmatpush1.msra.mxu0 0.0
      %553 = vmatprep.subr.mxu0 0.0
      %554 = vmatpush1.msra.mxu0 0.0
      %555 = vmatprep.subr.mxu0 0.0
      %556 = vmatpush1.msra.mxu0 0.0
      %557 = vmatprep.subr.mxu0 0.0
      %558 = vmatpush1.msra.mxu0 0.0
      %559 = vmatprep.subr.mxu0 0.0
      %560 = vmatpush1.msra.mxu0 0.0
      %561 = vmatprep.subr.mxu0 0.0
      %562 = vmatpush1.msra.mxu0 0.0
      %563 = vmatprep.subr.mxu0 0.0
      %564 = vmatpush1.msra.mxu0 0.0
      %565 = vmatprep.mubr.f32.mxu0 0.0
      %566 = vmatmul.mubr.f32.gmra.mrb[0].mxu0 %v477
      %v567 = vpop.f32.mrb[0].mxu0
      %v568 = vadd.f32 0.0, %v567
      %v569 = vpop.f32.mrb[0].mxu0
      %570 = vmatprep.mubr.f32.mxu0 0.0
      %571 = vmatmul.mubr.f32.gmra.mrb[0].mxu0 %v478
      %v572 = vpop.f32.mrb[0].mxu0
      %v573 = vadd.f32 0.0, %v572
      %v574 = vpop.f32.mrb[0].mxu0
      %575 = vmatprep.mubr.f32.mxu0 0.0
      %576 = vmatmul.mubr.f32.gmra.mrb[0].mxu0 %v479
      %v577 = vpop.f32.mrb[0].mxu0
      %v578 = vadd.f32 0.0, %v577
      %v579 = vpop.f32.mrb[0].mxu0
      %580 = vmatprep.mubr.f32.mxu0 0.0
      %581 = vmatmul.mubr.f32.gmra.mrb[0].mxu0 %v480
      %v582 = vpop.f32.mrb[0].mxu0
      %v583 = vadd.f32 0.0, %v582
      %v584 = vpop.f32.mrb[0].mxu0
      %585 = vmatprep.mubr.f32.mxu0 0.0
      %586 = vmatmul.mubr.f32.gmra.mrb[0].mxu0 %v481
      %v587 = vpop.f32.mrb[0].mxu0
      %v588 = vadd.f32 0.0, %v587
      %v589 = vpop.f32.mrb[0].mxu0
      %590 = vmatprep.mubr.f32.mxu0 0.0
      %591 = vmatmul.mubr.f32.gmra.mrb[0].mxu0 %v482
      %v592 = vpop.f32.mrb[0].mxu0
      %v593 = vadd.f32 0.0, %v592
      %v594 = vpop.f32.mrb[0].mxu0
      %595 = vmatprep.mubr.f32.mxu0 0.0
      %596 = vmatmul.mubr.f32.gmra.mrb[0].mxu0 %v483
      %v597 = vpop.f32.mrb[0].mxu0
      %v598 = vadd.f32 0.0, %v597
      %v599 = vpop.f32.mrb[0].mxu0
      %600 = vmatprep.mubr.f32.mxu0 0.0
      %601 = vmatmul.mubr.f32.gmra.mrb[0].mxu0 %v484
      %v602 = vpop.f32.mrb[0].mxu0
      %v603 = vadd.f32 0.0, %v602
      %v604 = vpop.f32.mrb[0].mxu0
      %605 = vdwg.mxu0
      %v606 = vmul.f32 %v447, %v447
      %v607 = vmul.f32 %v450, %v450
      %v608 = vmul.f32 %v455, %v455
      %v609 = vmul.f32 %v458, %v458
      %v610 = vmul.f32 %v463, %v463
      %v611 = vmul.f32 %v466, %v466
      %v612 = vmul.f32 %v471, %v471
      %v613 = vmul.f32 %v474, %v474
      %v614 = vsub.f32 %v568, %v606
      %v615 = vsub.f32 %v573, %v607
      %v616 = vsub.f32 %v578, %v608
      %v617 = vsub.f32 %v583, %v609
      %v618 = vsub.f32 %v588, %v610
      %v619 = vsub.f32 %v593, %v611
      %v620 = vsub.f32 %v598, %v612
      %v621 = vsub.f32 %v603, %v613
      %v622 = vmax.f32 %v614, 0.0
      %v623 = vmax.f32 %v615, 0.0
      %v624 = vmax.f32 %v616, 0.0
      %v625 = vmax.f32 %v617, 0.0
      %v626 = vmax.f32 %v618, 0.0
      %v627 = vmax.f32 %v619, 0.0
      %v628 = vmax.f32 %v620, 0.0
      %v629 = vmax.f32 %v621, 0.0
      %v630 = vadd.f32 %v622, 1e-05
      %v631 = vadd.f32 %v623, 1e-05
      %v632 = vadd.f32 %v624, 1e-05
      %v633 = vadd.f32 %v625, 1e-05
      %v634 = vadd.f32 %v626, 1e-05
      %v635 = vadd.f32 %v627, 1e-05
      %v636 = vadd.f32 %v628, 1e-05
      %v637 = vadd.f32 %v629, 1e-05
      %v638 = vrsqrt.pop %v630
      %v639 = vrsqrt.pop %v631
      %v640 = vrsqrt.pop %v632
      %v641 = vrsqrt.pop %v633
      %v642 = vrsqrt.pop %v634
      %v643 = vrsqrt.pop %v635
      %v644 = vrsqrt.pop %v636
      %v645 = vrsqrt.pop %v637
      %v646 = vld [vmem:[%s4] sm:$0x1]
      %v647 = vld [vmem:[%s5] sm:$0x1]
      %649 = vset.pattern.permute.xlu0 0
      %650 = vperm.xlu0 %649, %v447
      %v651 = vpop.permute.xlu0 %650
      %654 = vset.pattern.permute.xlu0 0
      %655 = vperm.xlu0 %654, %v450
      %v656 = vpop.permute.xlu0 %655
      %659 = vset.pattern.permute.xlu0 0
      %660 = vperm.xlu0 %659, %v455
      %v661 = vpop.permute.xlu0 %660
      %664 = vset.pattern.permute.xlu0 0
      %665 = vperm.xlu0 %664, %v458
      %v666 = vpop.permute.xlu0 %665
      %669 = vset.pattern.permute.xlu0 0
      %670 = vperm.xlu0 %669, %v463
      %v671 = vpop.permute.xlu0 %670
      %674 = vset.pattern.permute.xlu0 0
      %675 = vperm.xlu0 %674, %v466
      %v676 = vpop.permute.xlu0 %675
      %679 = vset.pattern.permute.xlu0 0
      %680 = vperm.xlu0 %679, %v471
      %v681 = vpop.permute.xlu0 %680
      %684 = vset.pattern.permute.xlu0 0
      %685 = vperm.xlu0 %684, %v474
      %v686 = vpop.permute.xlu0 %685
      %v688 = vsub.f32 %v350, %v651
      %v689 = vsub.f32 %v353, %v656
      %v690 = vsub.f32 %v358, %v661
      %v691 = vsub.f32 %v361, %v666
      %v692 = vsub.f32 %v366, %v671
      %v693 = vsub.f32 %v369, %v676
      %v694 = vsub.f32 %v374, %v681
      %v695 = vsub.f32 %v377, %v686
      %697 = vset.pattern.permute.xlu0 0
      %698 = vperm.xlu0 %697, %v638
      %v699 = vpop.permute.xlu0 %698
      %702 = vset.pattern.permute.xlu0 0
      %703 = vperm.xlu0 %702, %v639
      %v704 = vpop.permute.xlu0 %703
      %707 = vset.pattern.permute.xlu0 0
      %708 = vperm.xlu0 %707, %v640
      %v709 = vpop.permute.xlu0 %708
      %712 = vset.pattern.permute.xlu0 0
      %713 = vperm.xlu0 %712, %v641
      %v714 = vpop.permute.xlu0 %713
      %717 = vset.pattern.permute.xlu0 0
      %718 = vperm.xlu0 %717, %v642
      %v719 = vpop.permute.xlu0 %718
      %722 = vset.pattern.permute.xlu0 0
      %723 = vperm.xlu0 %722, %v643
      %v724 = vpop.permute.xlu0 %723
      %727 = vset.pattern.permute.xlu0 0
      %728 = vperm.xlu0 %727, %v644
      %v729 = vpop.permute.xlu0 %728
      %732 = vset.pattern.permute.xlu0 0
      %733 = vperm.xlu0 %732, %v645
      %v734 = vpop.permute.xlu0 %733
      %v736 = vmul.f32 %v688, %v699
      %v737 = vmul.f32 %v689, %v704
      %v738 = vmul.f32 %v690, %v709
      %v739 = vmul.f32 %v691, %v714
      %v740 = vmul.f32 %v692, %v719
      %v741 = vmul.f32 %v693, %v724
      %v742 = vmul.f32 %v694, %v729
      %v743 = vmul.f32 %v695, %v734
      %744 = vset.pattern.permute.xlu0 1
      %745 = vperm.xlu0 %744, %v447
      %v746 = vpop.permute.xlu0 %745
      %748 = vset.pattern.permute.xlu0 1
      %749 = vperm.xlu0 %748, %v450
      %v750 = vpop.permute.xlu0 %749
      %752 = vset.pattern.permute.xlu0 1
      %753 = vperm.xlu0 %752, %v455
      %v754 = vpop.permute.xlu0 %753
      %756 = vset.pattern.permute.xlu0 1
      %757 = vperm.xlu0 %756, %v458
      %v758 = vpop.permute.xlu0 %757
      %760 = vset.pattern.permute.xlu0 1
      %761 = vperm.xlu0 %760, %v463
      %v762 = vpop.permute.xlu0 %761
      %764 = vset.pattern.permute.xlu0 1
      %765 = vperm.xlu0 %764, %v466
      %v766 = vpop.permute.xlu0 %765
      %768 = vset.pattern.permute.xlu0 1
      %769 = vperm.xlu0 %768, %v471
      %v770 = vpop.permute.xlu0 %769
      %772 = vset.pattern.permute.xlu0 1
      %773 = vperm.xlu0 %772, %v474
      %v774 = vpop.permute.xlu0 %773
      %v776 = vsub.f32 %v350, %v746
      %v777 = vsub.f32 %v353, %v750
      %v778 = vsub.f32 %v358, %v754
      %v779 = vsub.f32 %v361, %v758
      %v780 = vsub.f32 %v366, %v762
      %v781 = vsub.f32 %v369, %v766
      %v782 = vsub.f32 %v374, %v770
      %v783 = vsub.f32 %v377, %v774
      %784 = vset.pattern.permute.xlu0 1
      %785 = vperm.xlu0 %784, %v638
      %v786 = vpop.permute.xlu0 %785
      %788 = vset.pattern.permute.xlu0 1
      %789 = vperm.xlu0 %788, %v639
      %v790 = vpop.permute.xlu0 %789
      %792 = vset.pattern.permute.xlu0 1
      %793 = vperm.xlu0 %792, %v640
      %v794 = vpop.permute.xlu0 %793
      %796 = vset.pattern.permute.xlu0 1
      %797 = vperm.xlu0 %796, %v641
      %v798 = vpop.permute.xlu0 %797
      %800 = vset.pattern.permute.xlu0 1
      %801 = vperm.xlu0 %800, %v642
      %v802 = vpop.permute.xlu0 %801
      %804 = vset.pattern.permute.xlu0 1
      %805 = vperm.xlu0 %804, %v643
      %v806 = vpop.permute.xlu0 %805
      %808 = vset.pattern.permute.xlu0 1
      %809 = vperm.xlu0 %808, %v644
      %v810 = vpop.permute.xlu0 %809
      %812 = vset.pattern.permute.xlu0 1
      %813 = vperm.xlu0 %812, %v645
      %v814 = vpop.permute.xlu0 %813
      %v816 = vmul.f32 %v776, %v786
      %v817 = vmul.f32 %v777, %v790
      %v818 = vmul.f32 %v778, %v794
      %v819 = vmul.f32 %v779, %v798
      %v820 = vmul.f32 %v780, %v802
      %v821 = vmul.f32 %v781, %v806
      %v822 = vmul.f32 %v782, %v810
      %v823 = vmul.f32 %v783, %v814
      %vm824 = vcmask 261120
      %v825 = vsel %vm824, %v736, %v816
      %v826 = vsel %vm824, %v737, %v817
      %v827 = vsel %vm824, %v738, %v818
      %v828 = vsel %vm824, %v739, %v819
      %v829 = vsel %vm824, %v740, %v820
      %v830 = vsel %vm824, %v741, %v821
      %v831 = vsel %vm824, %v742, %v822
      %v832 = vsel %vm824, %v743, %v823
      %v834 = vlaneseq
      %v835 = vshrl.u32 %v834, 7
      %v836 = vsub.s32 0, %v835
      %v837 = vrot.slane %v646, %v836
      %v839 = vmul.f32 %v825, %v837
      %v840 = vmul.f32 %v826, %v837
      %v841 = vmul.f32 %v827, %v837
      %v842 = vmul.f32 %v828, %v837
      %v843 = vmul.f32 %v829, %v837
      %v844 = vmul.f32 %v830, %v837
      %v845 = vmul.f32 %v831, %v837
      %v846 = vmul.f32 %v832, %v837
      %v848 = vlaneseq
      %v849 = vshrl.u32 %v848, 7
      %v850 = vsub.s32 0, %v849
      %v851 = vrot.slane %v647, %v850
      %v853 = vadd.f32 %v839, %v851
      %v854 = vadd.f32 %v840, %v851
      %v855 = vadd.f32 %v841, %v851
      %v856 = vadd.f32 %v842, %v851
      %v857 = vadd.f32 %v843, %v851
      %v858 = vadd.f32 %v844, %v851
      %v859 = vadd.f32 %v845, %v851
      %v860 = vadd.f32 %v846, %v851
      %861 = vst.msk [vmem:[%s255] sm:$0xff] %vm302, %v853
      %862 = vst.msk [vmem:[%s255 + $0x10] sm:$0xff] %vm302, %v854
      %863 = vst.msk [vmem:[%s255 + $0x20] sm:$0xff] %vm302, %v855
      %864 = vst.msk [vmem:[%s255 + $0x30] sm:$0xff] %vm302, %v856
      %865 = vst.msk [vmem:[%s255 + $0x40] sm:$0xff] %vm302, %v857
      %866 = vst.msk [vmem:[%s255 + $0x50] sm:$0xff] %vm302, %v858
      %867 = vst.msk [vmem:[%s255 + $0x60] sm:$0xff] %vm302, %v859
      %868 = vst.msk [vmem:[%s255 + $0x70] sm:$0xff] %vm302, %v860
      %869 = vset.pattern.permute.xlu0 2
      %870 = vperm.xlu0 %869, %v447
      %v871 = vpop.permute.xlu0 %870
      %873 = vset.pattern.permute.xlu0 2
      %874 = vperm.xlu0 %873, %v450
      %v875 = vpop.permute.xlu0 %874
      %877 = vset.pattern.permute.xlu0 2
      %878 = vperm.xlu0 %877, %v455
      %v879 = vpop.permute.xlu0 %878
      %881 = vset.pattern.permute.xlu0 2
      %882 = vperm.xlu0 %881, %v458
      %v883 = vpop.permute.xlu0 %882
      %885 = vset.pattern.permute.xlu0 2
      %886 = vperm.xlu0 %885, %v463
      %v887 = vpop.permute.xlu0 %886
      %889 = vset.pattern.permute.xlu0 2
      %890 = vperm.xlu0 %889, %v466
      %v891 = vpop.permute.xlu0 %890
      %893 = vset.pattern.permute.xlu0 2
      %894 = vperm.xlu0 %893, %v471
      %v895 = vpop.permute.xlu0 %894
      %897 = vset.pattern.permute.xlu0 2
      %898 = vperm.xlu0 %897, %v474
      %v899 = vpop.permute.xlu0 %898
      %v901 = vsub.f32 %v350, %v871
      %v902 = vsub.f32 %v353, %v875
      %v903 = vsub.f32 %v358, %v879
      %v904 = vsub.f32 %v361, %v883
      %v905 = vsub.f32 %v366, %v887
      %v906 = vsub.f32 %v369, %v891
      %v907 = vsub.f32 %v374, %v895
      %v908 = vsub.f32 %v377, %v899
      %909 = vset.pattern.permute.xlu0 2
      %910 = vperm.xlu0 %909, %v638
      %v911 = vpop.permute.xlu0 %910
      %913 = vset.pattern.permute.xlu0 2
      %914 = vperm.xlu0 %913, %v639
      %v915 = vpop.permute.xlu0 %914
      %917 = vset.pattern.permute.xlu0 2
      %918 = vperm.xlu0 %917, %v640
      %v919 = vpop.permute.xlu0 %918
      %921 = vset.pattern.permute.xlu0 2
      %922 = vperm.xlu0 %921, %v641
      %v923 = vpop.permute.xlu0 %922
      %925 = vset.pattern.permute.xlu0 2
      %926 = vperm.xlu0 %925, %v642
      %v927 = vpop.permute.xlu0 %926
      %929 = vset.pattern.permute.xlu0 2
      %930 = vperm.xlu0 %929, %v643
      %v931 = vpop.permute.xlu0 %930
      %933 = vset.pattern.permute.xlu0 2
      %934 = vperm.xlu0 %933, %v644
      %v935 = vpop.permute.xlu0 %934
      %937 = vset.pattern.permute.xlu0 2
      %938 = vperm.xlu0 %937, %v645
      %v939 = vpop.permute.xlu0 %938
      %v941 = vmul.f32 %v901, %v911
      %v942 = vmul.f32 %v902, %v915
      %v943 = vmul.f32 %v903, %v919
      %v944 = vmul.f32 %v904, %v923
      %v945 = vmul.f32 %v905, %v927
      %v946 = vmul.f32 %v906, %v931
      %v947 = vmul.f32 %v907, %v935
      %v948 = vmul.f32 %v908, %v939
      %949 = vset.pattern.permute.xlu0 3
      %950 = vperm.xlu0 %949, %v447
      %v951 = vpop.permute.xlu0 %950
      %953 = vset.pattern.permute.xlu0 3
      %954 = vperm.xlu0 %953, %v450
      %v955 = vpop.permute.xlu0 %954
      %957 = vset.pattern.permute.xlu0 3
      %958 = vperm.xlu0 %957, %v455
      %v959 = vpop.permute.xlu0 %958
      %961 = vset.pattern.permute.xlu0 3
      %962 = vperm.xlu0 %961, %v458
      %v963 = vpop.permute.xlu0 %962
      %965 = vset.pattern.permute.xlu0 3
      %966 = vperm.xlu0 %965, %v463
      %v967 = vpop.permute.xlu0 %966
      %969 = vset.pattern.permute.xlu0 3
      %970 = vperm.xlu0 %969, %v466
      %v971 = vpop.permute.xlu0 %970
      %973 = vset.pattern.permute.xlu0 3
      %974 = vperm.xlu0 %973, %v471
      %v975 = vpop.permute.xlu0 %974
      %977 = vset.pattern.permute.xlu0 3
      %978 = vperm.xlu0 %977, %v474
      %v979 = vpop.permute.xlu0 %978
      %v981 = vsub.f32 %v350, %v951
      %v982 = vsub.f32 %v353, %v955
      %v983 = vsub.f32 %v358, %v959
      %v984 = vsub.f32 %v361, %v963
      %v985 = vsub.f32 %v366, %v967
      %v986 = vsub.f32 %v369, %v971
      %v987 = vsub.f32 %v374, %v975
      %v988 = vsub.f32 %v377, %v979
      %989 = vset.pattern.permute.xlu0 3
      %990 = vperm.xlu0 %989, %v638
      %v991 = vpop.permute.xlu0 %990
      %993 = vset.pattern.permute.xlu0 3
      %994 = vperm.xlu0 %993, %v639
      %v995 = vpop.permute.xlu0 %994
      %997 = vset.pattern.permute.xlu0 3
      %998 = vperm.xlu0 %997, %v640
      %v999 = vpop.permute.xlu0 %998
      %1001 = vset.pattern.permute.xlu0 3
      %1002 = vperm.xlu0 %1001, %v641
      %v1003 = vpop.permute.xlu0 %1002
      %1005 = vset.pattern.permute.xlu0 3
      %1006 = vperm.xlu0 %1005, %v642
      %v1007 = vpop.permute.xlu0 %1006
      %1009 = vset.pattern.permute.xlu0 3
      %1010 = vperm.xlu0 %1009, %v643
      %v1011 = vpop.permute.xlu0 %1010
      %1013 = vset.pattern.permute.xlu0 3
      %1014 = vperm.xlu0 %1013, %v644
      %v1015 = vpop.permute.xlu0 %1014
      %1017 = vset.pattern.permute.xlu0 3
      %1018 = vperm.xlu0 %1017, %v645
      %v1019 = vpop.permute.xlu0 %1018
      %v1021 = vmul.f32 %v981, %v991
      %v1022 = vmul.f32 %v982, %v995
      %v1023 = vmul.f32 %v983, %v999
      %v1024 = vmul.f32 %v984, %v1003
      %v1025 = vmul.f32 %v985, %v1007
      %v1026 = vmul.f32 %v986, %v1011
      %v1027 = vmul.f32 %v987, %v1015
      %v1028 = vmul.f32 %v988, %v1019
      %1037 = vrot.lane.b32.xlu0 %v941, 64
      %v1038 = vpop.permute.xlu0 %1037
      %1039 = vrot.lane.b32.xlu0 %v942, 64
      %v1040 = vpop.permute.xlu0 %1039
      %1041 = vrot.lane.b32.xlu0 %v943, 64
      %v1042 = vpop.permute.xlu0 %1041
      %1043 = vrot.lane.b32.xlu0 %v944, 64
      %v1044 = vpop.permute.xlu0 %1043
      %1045 = vrot.lane.b32.xlu0 %v945, 64
      %v1046 = vpop.permute.xlu0 %1045
      %1047 = vrot.lane.b32.xlu0 %v946, 64
      %v1048 = vpop.permute.xlu0 %1047
      %1049 = vrot.lane.b32.xlu0 %v947, 64
      %v1050 = vpop.permute.xlu0 %1049
      %1051 = vrot.lane.b32.xlu0 %v948, 64
      %v1052 = vpop.permute.xlu0 %1051
      %1069 = vrot.lane.b32.xlu0 %v1021, 64
      %v1070 = vpop.permute.xlu0 %1069
      %1071 = vrot.lane.b32.xlu0 %v1022, 64
      %v1072 = vpop.permute.xlu0 %1071
      %1073 = vrot.lane.b32.xlu0 %v1023, 64
      %v1074 = vpop.permute.xlu0 %1073
      %1075 = vrot.lane.b32.xlu0 %v1024, 64
      %v1076 = vpop.permute.xlu0 %1075
      %1077 = vrot.lane.b32.xlu0 %v1025, 64
      %v1078 = vpop.permute.xlu0 %1077
      %1079 = vrot.lane.b32.xlu0 %v1026, 64
      %v1080 = vpop.permute.xlu0 %1079
      %1081 = vrot.lane.b32.xlu0 %v1027, 64
      %v1082 = vpop.permute.xlu0 %1081
      %1083 = vrot.lane.b32.xlu0 %v1028, 64
      %v1084 = vpop.permute.xlu0 %1083
      %v1093 = vsel %vm824, %v1038, %v1070
      %v1094 = vsel %vm824, %v1040, %v1072
      %v1095 = vsel %vm824, %v1042, %v1074
      %v1096 = vsel %vm824, %v1044, %v1076
      %v1097 = vsel %vm824, %v1046, %v1078
      %v1098 = vsel %vm824, %v1048, %v1080
      %v1099 = vsel %vm824, %v1050, %v1082
      %v1100 = vsel %vm824, %v1052, %v1084
      %v1101 = vmul.f32 %v1093, %v837
      %v1102 = vmul.f32 %v1094, %v837
      %v1103 = vmul.f32 %v1095, %v837
      %v1104 = vmul.f32 %v1096, %v837
      %v1105 = vmul.f32 %v1097, %v837
      %v1106 = vmul.f32 %v1098, %v837
      %v1107 = vmul.f32 %v1099, %v837
      %v1108 = vmul.f32 %v1100, %v837
      %v1109 = vadd.f32 %v1101, %v851
      %v1110 = vadd.f32 %v1102, %v851
      %v1111 = vadd.f32 %v1103, %v851
      %v1112 = vadd.f32 %v1104, %v851
      %v1113 = vadd.f32 %v1105, %v851
      %v1114 = vadd.f32 %v1106, %v851
      %v1115 = vadd.f32 %v1107, %v851
      %v1116 = vadd.f32 %v1108, %v851
      %s1117 = scalar_lea.vmem %s255, 8
      %1118 = vst.msk [vmem:[%s1117] sm:$0xff] %vm302, %v1109
      %1119 = vst.msk [vmem:[%s1117 + $0x10] sm:$0xff] %vm302, %v1110
      %1120 = vst.msk [vmem:[%s1117 + $0x20] sm:$0xff] %vm302, %v1111
      %1121 = vst.msk [vmem:[%s1117 + $0x30] sm:$0xff] %vm302, %v1112
      %1122 = vst.msk [vmem:[%s1117 + $0x40] sm:$0xff] %vm302, %v1113
      %1123 = vst.msk [vmem:[%s1117 + $0x50] sm:$0xff] %vm302, %v1114
      %1124 = vst.msk [vmem:[%s1117 + $0x60] sm:$0xff] %vm302, %v1115
      %1125 = vst.msk [vmem:[%s1117 + $0x70] sm:$0xff] %vm302, %v1116
      %s1126 = smul.u32 8, %s17
      %p1127 = scmp.lt.s32.totalorder %s1126, 15
      %s1128 = scalar_select %p1127, %s1126, 15
      %s1129 = smul.addr %s1128, 2
      %s1130 = smul.addr %s1129, 8
      %s1131 = scalar_lea.vmem %s6, %s1130
      // Predicated region
      $region45: #{patch_expand_2d.1} parent=43 // pred_check
        %p1132 = pneg %p166
      $region46: #{patch_expand_2d.1} parent=43 // pred_check_branch
        %1134 = sbr.rel (%p1132) target = $region48
      $region47: #{patch_expand_2d.1} parent=43 // pred_region
        %s1135 = smul.u32 8, %s17
      $region48: #{patch_expand_2d.1} parent=43 // pred_fallthru
        _
    $region44: #{patch_expand_2d.1} parent=5 // pred_fallthru
      _
    %p1136 = scmp.le.s32.totalorder 2, %s12
    // Predicated region
    $region49: #{patch_expand_2d.1} parent=5 // pred_check
      %p1137 = pneg %p1136
    $region50: #{patch_expand_2d.1} parent=5 // pred_check_branch
      %1139 = sbr.rel (%p1137) target = $region52
    $region51: #{patch_expand_2d.1} parent=5 // pred_region
      %s1140 = ssub.s32 %s12, 2
      // Predicated region
      $region53: #{patch_expand_2d.1} parent=51 // pred_check
        %p1141 = pneg %p172
      $region54: #{patch_expand_2d.1} parent=51 // pred_check_branch
        %1143 = sbr.rel (%p1141) target = $region56
      $region55: #{patch_expand_2d.1} parent=51 // pred_region
        %s1144 = smul.u32 8, %s18
        %p1145 = scmp.lt.s32.totalorder %s1144, 15
        %s1146 = scalar_select %p1145, %s1144, 15
        %s1147 = smul.addr %s1146, 2
        %s1148 = smul.addr %s1147, 8
        %s1149 = scalar_lea.vmem %s6, %s1148
      $region56: #{patch_expand_2d.1} parent=51 // pred_fallthru
        _
    $region52: #{patch_expand_2d.1} parent=5 // pred_fallthru
      _
  $region6: #{patch_expand_2d.1} parent=0 // loop_footer
    %s16 = sadd.s32 1, %s12
  $region7: #{patch_expand_2d.1} parent=0 // loop_footer_branch
    %11 = sbr.rel target = $region3
  $region8: #{patch_expand_2d.1} parent=0 // loop_exit
    _

</llo_original>
